<compile_context>
chip_gen: v7x
topology: tpu7x:2x2x1
jax: 0.10.0
libtpu: 0.0.40
codegen_flags: <defaults>
</compile_context>

<pallas_src>
import jax
import jax.numpy as jnp
from jax.experimental import pallas as pl
from jax.experimental.pallas import tpu as pltpu

INPUT_DIM = 12
HIDDEN_DIM = 128
OUTPUT_DIM = 6                 # len(ACTION_TABLE)
PAD_IN = 16                    # INPUT_DIM padded to a sublane multiple (explicit K padding)
FUSED_H = 2 * HIDDEN_DIM       # actor | critic fused hidden width (256)
OUT_PAD = 8                    # cols 0..5 actor logits, col 6 critic value, col 7 pad


# ---------------------------------------------------------------------------
# Kernels
# ---------------------------------------------------------------------------

def _fused_layer1(x_ref, w1_ref, b1_ref, a1_ref):
    """Layer 1 for both heads: (TB,16) @ (16,256) + bias, PReLU fused with MXU-dtype cast."""
    mm_dtype = w1_ref.dtype
    x = x_ref[...].astype(mm_dtype)                       # cast in-kernel (free on VPU)
    h = jnp.dot(x, w1_ref[...], preferred_element_type=jnp.float32) + b1_ref[...]
    # PReLU + cast fused: only the narrow (matmul-dtype) activation materializes.
    return jnp.where(h > 0, h, a1_ref[...] * h).astype(mm_dtype)


def actor_critic_kernel_fused(x_ref, w1_ref, b1_ref, a1_ref,
                              w2_ref, b2_ref, a2_ref,
                              w3_ref, b3_ref, out_ref):
    """v6e/v7x path: block-diagonal 256x256 layer 2 done in one MXU pass per row-chunk."""
    mm_dtype = w1_ref.dtype
    h1 = _fused_layer1(x_ref, w1_ref, b1_ref, a1_ref)     # (TB, 256) mm_dtype

    h2 = jnp.dot(h1, w2_ref[...], preferred_element_type=jnp.float32) + b2_ref[...]
    h2 = jnp.where(h2 > 0, h2, a2_ref[...] * h2).astype(mm_dtype)

    out = jnp.dot(h2, w3_ref[...], preferred_element_type=jnp.float32) + b3_ref[...]
    out_ref[...] = out.astype(out_ref.dtype)


def actor_critic_kernel_split(x_ref, w1_ref, b1_ref, a1_ref,
                              w2a_ref, w2c_ref, b2_ref, a2_ref,
                              w3a_ref, w3c_ref, b3_ref, out_ref):
    """v5e path: 128x128 MXU -> do layer 2/3 as per-head 128-wide matmuls (no zero blocks)."""
    mm_dtype = w1_ref.dtype
    h1 = _fused_layer1(x_ref, w1_ref, b1_ref, a1_ref)     # (TB, 256) mm_dtype
    ha = h1[:, :HIDDEN_DIM]
    hc = h1[:, HIDDEN_DIM:]

    h2a = jnp.dot(ha, w2a_ref[...], preferred_element_type=jnp.float32) + b2_ref[:, :HIDDEN_DIM]
    h2c = jnp.dot(hc, w2c_ref[...], preferred_element_type=jnp.float32) + b2_ref[:, HIDDEN_DIM:]
    h2a = jnp.where(h2a > 0, h2a, a2_ref[:, :HIDDEN_DIM] * h2a).astype(mm_dtype)
    h2c = jnp.where(h2c > 0, h2c, a2_ref[:, HIDDEN_DIM:] * h2c).astype(mm_dtype)

    out = (jnp.dot(h2a, w3a_ref[...], preferred_element_type=jnp.float32)
           + jnp.dot(h2c, w3c_ref[...], preferred_element_type=jnp.float32)
           + b3_ref[...])
    out_ref[...] = out.astype(out_ref.dtype)


# ---------------------------------------------------------------------------
# Wrapper
# ---------------------------------------------------------------------------

def _round_up(x, m):
    return (x + m - 1) // m * m


def _needs_split_layer2():
    """True on chips whose MXU is 128x128 (v5e and older): the fused block-diagonal
    256x256 layer 2 would waste ~half the MXU passes on all-zero off-diagonal blocks."""
    try:
        kind = jax.devices()[0].device_kind.lower()
    except Exception:
        return False
    return not ("v6" in kind or "v7" in kind)


def _pick_batch_tile(B, block_b):
    """Large tiles to amortize grid-step overhead; >=2 tiles for moderate/large batches
    so the 'parallel' batch axis actually feeds both TensorCores on v7x."""
    b16 = _round_up(max(B, 1), 16)
    if b16 <= block_b:
        if b16 >= 1024:
            tb = _round_up(pl.cdiv(b16, 2), 16)    # 2 roughly-equal tiles (megacore)
        else:
            tb = b16                               # one tile covers the whole batch
    else:
        tb = block_b
    b_pad = _round_up(B, tb)
    return tb, b_pad


def actor_critic_forward(state, packed, *, block_b=2048, split_layer2=None):
    """state: (B, INPUT_DIM) f32. Returns (action_pred (B,6), value_pred (B,1))."""
    if split_layer2 is None:
        split_layer2 = _needs_split_layer2()

    B = state.shape[0]
    tb, b_pad = _pick_batch_tile(B, block_b)
    grid = (b_pad // tb,)

    # Only pad here (batch to a tile multiple, K 12->16 with zeros). Input stays f32;
    # the cast to the MXU dtype happens inside the kernel on the VMEM tile.
    x = jnp.pad(state.astype(jnp.float32), ((0, b_pad - B), (0, PAD_IN - INPUT_DIM)))

    const = lambda i: (0, 0)   # weights/biases/slopes: VMEM-resident across the grid
    tile = lambda i: (i, 0)    # batch-tiled arrays: double-buffered by Pallas

    def cspec(shape):
        return pl.BlockSpec(shape, const)

    head = [
        (x, pl.BlockSpec((tb, PAD_IN), tile)),
        (packed["w1"], cspec((PAD_IN, FUSED_H))),
        (packed["b1"], cspec((1, FUSED_H))),
        (packed["a1"], cspec((1, FUSED_H))),
    ]
    if split_layer2:
        kernel = actor_critic_kernel_split
        mids = [
            (packed["w2a"], cspec((HIDDEN_DIM, HIDDEN_DIM))),
            (packed["w2c"], cspec((HIDDEN_DIM, HIDDEN_DIM))),
            (packed["b2"], cspec((1, FUSED_H))),
            (packed["a2"], cspec((1, FUSED_H))),
            (packed["w3a"], cspec((HIDDEN_DIM, OUT_PAD))),
            (packed["w3c"], cspec((HIDDEN_DIM, OUT_PAD))),
            (packed["b3"], cspec((1, OUT_PAD))),
        ]
    else:
        kernel = actor_critic_kernel_fused
        mids = [
            (packed["w2"], cspec((FUSED_H, FUSED_H))),
            (packed["b2"], cspec((1, FUSED_H))),
            (packed["a2"], cspec((1, FUSED_H))),
            (packed["w3"], cspec((FUSED_H, OUT_PAD))),
            (packed["b3"], cspec((1, OUT_PAD))),
        ]

    args = [a for a, _ in head + mids]
    in_specs = [s for _, s in head + mids]

    param_bytes = sum(int(v.size) * jnp.dtype(v.dtype).itemsize for v in packed.values())
    cost = pl.CostEstimate(
        flops=2 * b_pad * (PAD_IN * FUSED_H + FUSED_H * FUSED_H + FUSED_H * OUT_PAD),
        transcendentals=0,
        bytes_accessed=b_pad * PAD_IN * 4 + b_pad * OUT_PAD * 4 + param_bytes,
    )

    out = pl.pallas_call(
        kernel,
        out_shape=jax.ShapeDtypeStruct((b_pad, OUT_PAD), jnp.float32),
        grid=grid,
        in_specs=in_specs,
        out_specs=pl.BlockSpec((tb, OUT_PAD), tile),
        compiler_params=pltpu.CompilerParams(
            # Batch tiles are independent: shard across both TensorCores on v7x.
            dimension_semantics=("parallel",),
            # Explicit headroom for large batch tiles; well under v7x's 64 MiB physical.
            vmem_limit_bytes=48 * 1024 * 1024,
        ),
        cost_estimate=cost,
    )(*args)

    action_pred = out[:B, :OUTPUT_DIM]
    value_pred = out[:B, OUTPUT_DIM:OUTPUT_DIM + 1]
    return action_pred, value_pred


# ---------------------------------------------------------------------------
# Parameter construction (matches the PyTorch module layout) + fused packing.
# ---------------------------------------------------------------------------

def _xavier_normal(key, in_dim, out_dim):
    # nn.init.xavier_normal_: std = gain * sqrt(2 / (fan_in + fan_out)), gain=1
    std = (2.0 / (in_dim + out_dim)) ** 0.5
    # stored as (in_dim, out_dim) so the kernel does x @ W
    return std * jax.random.normal(key, (in_dim, out_dim), dtype=jnp.float32)


def make_params(key):
    keys = jax.random.split(key, 6)
    return {
        # actor: 12 -> 128 -> 128 -> 6
        "aw1": _xavier_normal(keys[0], INPUT_DIM, HIDDEN_DIM),
        "ab1": jnp.zeros((1, HIDDEN_DIM), jnp.float32),
        "aa1": jnp.full((1, 1), 0.25, jnp.float32),
        "aw2": _xavier_normal(keys[1], HIDDEN_DIM, HIDDEN_DIM),
        "ab2": jnp.zeros((1, HIDDEN_DIM), jnp.float32),
        "aa2": jnp.full((1, 1), 0.25, jnp.float32),
        "aw3": _xavier_normal(keys[2], HIDDEN_DIM, OUTPUT_DIM),
        "ab3": jnp.zeros((1, OUTPUT_DIM), jnp.float32),
        # critic: 12 -> 128 -> 128 -> 1
        "cw1": _xavier_normal(keys[3], INPUT_DIM, HIDDEN_DIM),
        "cb1": jnp.zeros((1, HIDDEN_DIM), jnp.float32),
        "ca1": jnp.full((1, 1), 0.25, jnp.float32),
        "cw2": _xavier_normal(keys[4], HIDDEN_DIM, HIDDEN_DIM),
        "cb2": jnp.zeros((1, HIDDEN_DIM), jnp.float32),
        "ca2": jnp.full((1, 1), 0.25, jnp.float32),
        "cw3": _xavier_normal(keys[5], HIDDEN_DIM, 1),
        "cb3": jnp.zeros((1, 1), jnp.float32),
    }


def pack_params(p, matmul_dtype=jnp.bfloat16):
    """Fuse actor+critic weights into the wide matmul operands used by the kernels.

    Weights are cast to `matmul_dtype` (bf16 for production: ~3x fewer MXU passes than
    f32 on the 256-wide MXUs, with f32 accumulation); biases and PReLU slopes stay f32.
    """
    H = HIDDEN_DIM
    # Layer 1: (PAD_IN, 2H), rows 12..15 are zero padding of the K dim.
    w1 = jnp.zeros((PAD_IN, FUSED_H), jnp.float32)
    w1 = w1.at[:INPUT_DIM, :H].set(p["aw1"]).at[:INPUT_DIM, H:].set(p["cw1"])
    b1 = jnp.concatenate([p["ab1"], p["cb1"]], axis=1)
    # Layer 2: fused block-diagonal (2H, 2H) + unfused per-head (H, H) for v5e.
    w2 = jnp.zeros((FUSED_H, FUSED_H), jnp.float32)
    w2 = w2.at[:H, :H].set(p["aw2"]).at[H:, H:].set(p["cw2"])
    b2 = jnp.concatenate([p["ab2"], p["cb2"]], axis=1)
    # Layer 3: (2H, OUT_PAD): cols 0..5 actor, col 6 critic value, col 7 pad.
    w3 = jnp.zeros((FUSED_H, OUT_PAD), jnp.float32)
    w3 = w3.at[:H, :OUTPUT_DIM].set(p["aw3"])
    w3 = w3.at[H:, OUTPUT_DIM:OUTPUT_DIM + 1].set(p["cw3"])
    b3 = jnp.zeros((1, OUT_PAD), jnp.float32)
    b3 = b3.at[:, :OUTPUT_DIM].set(p["ab3"])
    b3 = b3.at[:, OUTPUT_DIM:OUTPUT_DIM + 1].set(p["cb3"])
    # PReLU slopes precomputed on the host as (1, 2H) vectors (no in-kernel iota/select).
    a1 = jnp.concatenate([jnp.broadcast_to(p["aa1"], (1, H)),
                          jnp.broadcast_to(p["ca1"], (1, H))], axis=1).astype(jnp.float32)
    a2 = jnp.concatenate([jnp.broadcast_to(p["aa2"], (1, H)),
                          jnp.broadcast_to(p["ca2"], (1, H))], axis=1).astype(jnp.float32)
    return {
        "w1": w1.astype(matmul_dtype), "b1": b1, "a1": a1,
        "w2": w2.astype(matmul_dtype),
        "w2a": w2[:H, :H].astype(matmul_dtype),
        "w2c": w2[H:, H:].astype(matmul_dtype),
        "b2": b2, "a2": a2,
        "w3": w3.astype(matmul_dtype),
        "w3a": w3[:H, :].astype(matmul_dtype),
        "w3c": w3[H:, :].astype(matmul_dtype),
        "b3": b3,
    }


def reference_forward(state, p):
    """Pure-JAX f32 reference (unfused, same math) for correctness checks."""
    def mlp(x, w1, b1, a1, w2, b2, a2, w3, b3):
        h = x @ w1 + b1
        h = jnp.where(h > 0, h, a1 * h)
        h = h @ w2 + b2
        h = jnp.where(h > 0, h, a2 * h)
        return h @ w3 + b3

    act = mlp(state, p["aw1"], p["ab1"], p["aa1"][0, 0], p["aw2"], p["ab2"],
              p["aa2"][0, 0], p["aw3"], p["ab3"])
    val = mlp(state, p["cw1"], p["cb1"], p["ca1"][0, 0], p["cw2"], p["cb2"],
              p["ca2"][0, 0], p["cw3"], p["cb3"])
    return act, val


if __name__ == "__main__":
    key = jax.random.PRNGKey(0)
    pkey, xkey = jax.random.split(key)
    params = make_params(pkey)

    B = 8
    state = jax.random.normal(xkey, (B, INPUT_DIM), dtype=jnp.float32)
    ref_act, ref_val = reference_forward(state, params)

    # ---- f32 MXU operands, auto layer-2 layout for this chip: strict check -----
    packed_f32 = pack_params(params, matmul_dtype=jnp.float32)
    act, val = actor_critic_forward(state, packed_f32)
    act, val = jax.block_until_ready((act, val))
    assert act.shape == (B, OUTPUT_DIM) and val.shape == (B, 1)
    assert jnp.allclose(act, ref_act, atol=1e-4, rtol=1e-4)
    assert jnp.allclose(val, ref_val, atol=1e-4, rtol=1e-4)

    # ---- bf16 MXU operands (f32 accumulation): looser tolerance ----------------
    packed_bf16 = pack_params(params, matmul_dtype=jnp.bfloat16)
    act_bf, val_bf = actor_critic_forward(state, packed_bf16)
    act_bf, val_bf = jax.block_until_ready((act_bf, val_bf))
    assert jnp.allclose(act_bf, ref_act, atol=5e-2, rtol=5e-2)
    assert jnp.allclose(val_bf, ref_val, atol=5e-2, rtol=5e-2)

    # ---- multi-tile batch grid + batch padding + the split (v5e) layer-2 path ---
    B2 = 40
    state2 = jax.random.normal(jax.random.fold_in(xkey, 1), (B2, INPUT_DIM),
                               dtype=jnp.float32)
    ref_act2, ref_val2 = reference_forward(state2, params)
    act2, val2 = actor_critic_forward(state2, packed_f32, block_b=16, split_layer2=True)
    act2, val2 = jax.block_until_ready((act2, val2))
    assert act2.shape == (B2, OUTPUT_DIM) and val2.shape == (B2, 1)
    assert jnp.allclose(act2, ref_act2, atol=1e-4, rtol=1e-4)
    assert jnp.allclose(val2, ref_val2, atol=1e-4, rtol=1e-4)

    # ---- and the fused layer-2 path explicitly (both kernels compile anywhere) --
    act3, val3 = actor_critic_forward(state2, packed_f32, block_b=16, split_layer2=False)
    act3, val3 = jax.block_until_ready((act3, val3))
    assert jnp.allclose(act3, ref_act2, atol=1e-4, rtol=1e-4)
    assert jnp.allclose(val3, ref_val2, atol=1e-4, rtol=1e-4)

    print("KERNEL_OK")
</pallas_src>

<mosaic_0001>
module attributes {stable_mosaic.version = 11 : i64} {
  func.func @actor_critic_kernel_split(%arg0: i32, %arg1: memref<16x16xf32, #tpu.memory_space<vmem>>, %arg2: memref<16x256xf32, #tpu.memory_space<vmem>>, %arg3: memref<1x256xf32, #tpu.memory_space<vmem>>, %arg4: memref<1x256xf32, #tpu.memory_space<vmem>>, %arg5: memref<128x128xf32, #tpu.memory_space<vmem>>, %arg6: memref<128x128xf32, #tpu.memory_space<vmem>>, %arg7: memref<1x256xf32, #tpu.memory_space<vmem>>, %arg8: memref<1x256xf32, #tpu.memory_space<vmem>>, %arg9: memref<128x8xf32, #tpu.memory_space<vmem>>, %arg10: memref<128x8xf32, #tpu.memory_space<vmem>>, %arg11: memref<1x8xf32, #tpu.memory_space<vmem>>, %arg12: memref<16x8xf32, #tpu.memory_space<vmem>>) attributes {dimension_semantics = [#tpu.dimension_semantics<parallel>], iteration_bounds = array<i64: 1>, scalar_prefetch = 0 : i64, scratch_operands = 0 : i64, tpu.core_type = #tpu.core_type<tc>, window_params = [{transform_indices = @transform_0, window_bounds = array<i64: 16, 16>}, {pipeline_mode = #tpu.pipeline_mode<synchronous>, transform_indices = @transform_1, window_bounds = array<i64: 16, 256>}, {pipeline_mode = #tpu.pipeline_mode<synchronous>, transform_indices = @transform_2, window_bounds = array<i64: 1, 256>}, {pipeline_mode = #tpu.pipeline_mode<synchronous>, transform_indices = @transform_3, window_bounds = array<i64: 1, 256>}, {pipeline_mode = #tpu.pipeline_mode<synchronous>, transform_indices = @transform_4, window_bounds = array<i64: 128, 128>}, {pipeline_mode = #tpu.pipeline_mode<synchronous>, transform_indices = @transform_5, window_bounds = array<i64: 128, 128>}, {pipeline_mode = #tpu.pipeline_mode<synchronous>, transform_indices = @transform_6, window_bounds = array<i64: 1, 256>}, {pipeline_mode = #tpu.pipeline_mode<synchronous>, transform_indices = @transform_7, window_bounds = array<i64: 1, 256>}, {pipeline_mode = #tpu.pipeline_mode<synchronous>, transform_indices = @transform_8, window_bounds = array<i64: 128, 8>}, {pipeline_mode = #tpu.pipeline_mode<synchronous>, transform_indices = @transform_9, window_bounds = array<i64: 128, 8>}, {pipeline_mode = #tpu.pipeline_mode<synchronous>, transform_indices = @transform_10, window_bounds = array<i64: 1, 8>}, {transform_indices = @transform_11, window_bounds = array<i64: 16, 8>}]} {
    %c0 = arith.constant 0 : index
    %c0_0 = arith.constant 0 : index
    %0 = vector.load %arg1[%c0, %c0_0] : memref<16x16xf32, #tpu.memory_space<vmem>>, vector<16x16xf32>
    %c0_1 = arith.constant 0 : index
    %c0_2 = arith.constant 0 : index
    %1 = vector.load %arg2[%c0_1, %c0_2] : memref<16x256xf32, #tpu.memory_space<vmem>>, vector<16x256xf32>
    %cst = arith.constant dense<0.000000e+00> : vector<16x256xf32>
    %2 = tpu.matmul %0, %1, %cst {dimension_numbers = #tpu.dot_dimension_numbers<[1], [0], [0], [1], [0, 0, 1, 1], [], []>} : vector<16x16xf32>, vector<16x256xf32>, vector<16x256xf32> -> vector<16x256xf32>
    %c0_3 = arith.constant 0 : index
    %c0_4 = arith.constant 0 : index
    %3 = vector.load %arg3[%c0_3, %c0_4] : memref<1x256xf32, #tpu.memory_space<vmem>>, vector<1x256xf32>
    %4 = vector.broadcast %3 : vector<1x256xf32> to vector<16x256xf32>
    %5 = arith.addf %2, %4 : vector<16x256xf32>
    %cst_5 = arith.constant 0.000000e+00 : f32
    %6 = vector.broadcast %cst_5 : f32 to vector<16x256xf32>
    %7 = arith.cmpf ogt, %5, %6 : vector<16x256xf32>
    %c0_6 = arith.constant 0 : index
    %c0_7 = arith.constant 0 : index
    %8 = vector.load %arg4[%c0_6, %c0_7] : memref<1x256xf32, #tpu.memory_space<vmem>>, vector<1x256xf32>
    %9 = vector.broadcast %8 : vector<1x256xf32> to vector<16x256xf32>
    %10 = arith.mulf %9, %5 : vector<16x256xf32>
    %11 = arith.select %7, %5, %10 : vector<16x256xi1>, vector<16x256xf32>
    %12 = vector.extract_strided_slice %11 {offsets = [0, 0], sizes = [16, 128], strides = [1, 1]} : vector<16x256xf32> to vector<16x128xf32>
    %13 = vector.extract_strided_slice %11 {offsets = [0, 128], sizes = [16, 128], strides = [1, 1]} : vector<16x256xf32> to vector<16x128xf32>
    %c0_8 = arith.constant 0 : index
    %c0_9 = arith.constant 0 : index
    %14 = vector.load %arg5[%c0_8, %c0_9] : memref<128x128xf32, #tpu.memory_space<vmem>>, vector<128x128xf32>
    %cst_10 = arith.constant dense<0.000000e+00> : vector<16x128xf32>
    %15 = tpu.matmul %12, %14, %cst_10 {dimension_numbers = #tpu.dot_dimension_numbers<[1], [0], [0], [1], [0, 0, 1, 1], [], []>} : vector<16x128xf32>, vector<128x128xf32>, vector<16x128xf32> -> vector<16x128xf32>
    %c0_11 = arith.constant 0 : index
    %c0_12 = arith.constant 0 : index
    %16 = vector.load %arg7[%c0_11, %c0_12] : memref<1x256xf32, #tpu.memory_space<vmem>>, vector<1x128xf32>
    %17 = vector.broadcast %16 : vector<1x128xf32> to vector<16x128xf32>
    %18 = arith.addf %15, %17 : vector<16x128xf32>
    %c0_13 = arith.constant 0 : index
    %c0_14 = arith.constant 0 : index
    %19 = vector.load %arg6[%c0_13, %c0_14] : memref<128x128xf32, #tpu.memory_space<vmem>>, vector<128x128xf32>
    %cst_15 = arith.constant dense<0.000000e+00> : vector<16x128xf32>
    %20 = tpu.matmul %13, %19, %cst_15 {dimension_numbers = #tpu.dot_dimension_numbers<[1], [0], [0], [1], [0, 0, 1, 1], [], []>} : vector<16x128xf32>, vector<128x128xf32>, vector<16x128xf32> -> vector<16x128xf32>
    %c0_16 = arith.constant 0 : index
    %c128 = arith.constant 128 : index
    %21 = vector.load %arg7[%c0_16, %c128] : memref<1x256xf32, #tpu.memory_space<vmem>>, vector<1x128xf32>
    %22 = vector.broadcast %21 : vector<1x128xf32> to vector<16x128xf32>
    %23 = arith.addf %20, %22 : vector<16x128xf32>
    %cst_17 = arith.constant 0.000000e+00 : f32
    %24 = vector.broadcast %cst_17 : f32 to vector<16x128xf32>
    %25 = arith.cmpf ogt, %18, %24 : vector<16x128xf32>
    %c0_18 = arith.constant 0 : index
    %c0_19 = arith.constant 0 : index
    %26 = vector.load %arg8[%c0_18, %c0_19] : memref<1x256xf32, #tpu.memory_space<vmem>>, vector<1x128xf32>
    %27 = vector.broadcast %26 : vector<1x128xf32> to vector<16x128xf32>
    %28 = arith.mulf %27, %18 : vector<16x128xf32>
    %29 = arith.select %25, %18, %28 : vector<16x128xi1>, vector<16x128xf32>
    %cst_20 = arith.constant 0.000000e+00 : f32
    %30 = vector.broadcast %cst_20 : f32 to vector<16x128xf32>
    %31 = arith.cmpf ogt, %23, %30 : vector<16x128xf32>
    %c0_21 = arith.constant 0 : index
    %c128_22 = arith.constant 128 : index
    %32 = vector.load %arg8[%c0_21, %c128_22] : memref<1x256xf32, #tpu.memory_space<vmem>>, vector<1x128xf32>
    %33 = vector.broadcast %32 : vector<1x128xf32> to vector<16x128xf32>
    %34 = arith.mulf %33, %23 : vector<16x128xf32>
    %35 = arith.select %31, %23, %34 : vector<16x128xi1>, vector<16x128xf32>
    %c0_23 = arith.constant 0 : index
    %c0_24 = arith.constant 0 : index
    %36 = vector.load %arg9[%c0_23, %c0_24] : memref<128x8xf32, #tpu.memory_space<vmem>>, vector<128x8xf32>
    %cst_25 = arith.constant dense<0.000000e+00> : vector<16x8xf32>
    %37 = tpu.matmul %29, %36, %cst_25 {dimension_numbers = #tpu.dot_dimension_numbers<[1], [0], [0], [1], [0, 0, 1, 1], [], []>} : vector<16x128xf32>, vector<128x8xf32>, vector<16x8xf32> -> vector<16x8xf32>
    %c0_26 = arith.constant 0 : index
    %c0_27 = arith.constant 0 : index
    %38 = vector.load %arg10[%c0_26, %c0_27] : memref<128x8xf32, #tpu.memory_space<vmem>>, vector<128x8xf32>
    %cst_28 = arith.constant dense<0.000000e+00> : vector<16x8xf32>
    %39 = tpu.matmul %35, %38, %cst_28 {dimension_numbers = #tpu.dot_dimension_numbers<[1], [0], [0], [1], [0, 0, 1, 1], [], []>} : vector<16x128xf32>, vector<128x8xf32>, vector<16x8xf32> -> vector<16x8xf32>
    %40 = arith.addf %37, %39 : vector<16x8xf32>
    %c0_29 = arith.constant 0 : index
    %c0_30 = arith.constant 0 : index
    %41 = vector.load %arg11[%c0_29, %c0_30] : memref<1x8xf32, #tpu.memory_space<vmem>>, vector<1x8xf32>
    %42 = vector.broadcast %41 : vector<1x8xf32> to vector<16x8xf32>
    %43 = arith.addf %40, %42 : vector<16x8xf32>
    %c0_31 = arith.constant 0 : index
    %c0_32 = arith.constant 0 : index
    %44 = vector.load %arg12[%c0_31, %c0_32] : memref<16x8xf32, #tpu.memory_space<vmem>>, vector<16x8xf32>
    tpu.vector_store %arg12[%c0_31, %c0_32], %43 {strides = array<i32>} : memref<16x8xf32, #tpu.memory_space<vmem>>, vector<16x8xf32>,
    return
  }
  func.func @transform_0(%arg0: i32) -> (i32, i32) {
    %c0_i32 = arith.constant 0 : i32
    %c0_i32_0 = arith.constant 0 : i32
    return %arg0, %c0_i32 : i32, i32
  }
  func.func @transform_1(%arg0: i32) -> (i32, i32) {
    %c0_i32 = arith.constant 0 : i32
    %c0_i32_0 = arith.constant 0 : i32
    %c0_i32_1 = arith.constant 0 : i32
    return %c0_i32, %c0_i32_0 : i32, i32
  }
  func.func @transform_2(%arg0: i32) -> (i32, i32) {
    %c0_i32 = arith.constant 0 : i32
    %c0_i32_0 = arith.constant 0 : i32
    %c0_i32_1 = arith.constant 0 : i32
    return %c0_i32, %c0_i32_0 : i32, i32
  }
  func.func @transform_3(%arg0: i32) -> (i32, i32) {
    %c0_i32 = arith.constant 0 : i32
    %c0_i32_0 = arith.constant 0 : i32
    %c0_i32_1 = arith.constant 0 : i32
    return %c0_i32, %c0_i32_0 : i32, i32
  }
  func.func @transform_4(%arg0: i32) -> (i32, i32) {
    %c0_i32 = arith.constant 0 : i32
    %c0_i32_0 = arith.constant 0 : i32
    %c0_i32_1 = arith.constant 0 : i32
    return %c0_i32, %c0_i32_0 : i32, i32
  }
  func.func @transform_5(%arg0: i32) -> (i32, i32) {
    %c0_i32 = arith.constant 0 : i32
    %c0_i32_0 = arith.constant 0 : i32
    %c0_i32_1 = arith.constant 0 : i32
    return %c0_i32, %c0_i32_0 : i32, i32
  }
  func.func @transform_6(%arg0: i32) -> (i32, i32) {
    %c0_i32 = arith.constant 0 : i32
    %c0_i32_0 = arith.constant 0 : i32
    %c0_i32_1 = arith.constant 0 : i32
    return %c0_i32, %c0_i32_0 : i32, i32
  }
  func.func @transform_7(%arg0: i32) -> (i32, i32) {
    %c0_i32 = arith.constant 0 : i32
    %c0_i32_0 = arith.constant 0 : i32
    %c0_i32_1 = arith.constant 0 : i32
    return %c0_i32, %c0_i32_0 : i32, i32
  }
  func.func @transform_8(%arg0: i32) -> (i32, i32) {
    %c0_i32 = arith.constant 0 : i32
    %c0_i32_0 = arith.constant 0 : i32
    %c0_i32_1 = arith.constant 0 : i32
    return %c0_i32, %c0_i32_0 : i32, i32
  }
  func.func @transform_9(%arg0: i32) -> (i32, i32) {
    %c0_i32 = arith.constant 0 : i32
    %c0_i32_0 = arith.constant 0 : i32
    %c0_i32_1 = arith.constant 0 : i32
    return %c0_i32, %c0_i32_0 : i32, i32
  }
  func.func @transform_10(%arg0: i32) -> (i32, i32) {
    %c0_i32 = arith.constant 0 : i32
    %c0_i32_0 = arith.constant 0 : i32
    %c0_i32_1 = arith.constant 0 : i32
    return %c0_i32, %c0_i32_0 : i32, i32
  }
  func.func @transform_11(%arg0: i32) -> (i32, i32) {
    %c0_i32 = arith.constant 0 : i32
    %c0_i32_0 = arith.constant 0 : i32
    return %arg0, %c0_i32 : i32, i32
  }
}

</mosaic_0001>

<llo_original>
// kernel: tpu_custom_call.1
$region0: #{tpu_custom_call.1}
  #allocation0 [shape = 'u32[]', space=smem, size = 0x4, offset = 0x4, fixed_abs, tag = 'smem constant byte address 0x4 - core index']
  #allocation1 [shape = 'u32[144,128]{1,0:T(1,128)}', space=vmem, size = 0x12000, scoped, tag = 'internal scratch']
  %s0 = inlined_call_operand.vmem [shape: f32[16,16], index: 0, kind: input, shape index: {}]
  %s1 = inlined_call_operand.hbm [shape: f32[16,256], index: 1, kind: input, shape index: {}]
  %s2 = inlined_call_operand.vmem [shape: f32[1,256], index: 2, kind: input, shape index: {}]
  %s3 = inlined_call_operand.hbm [shape: f32[1,256], index: 3, kind: input, shape index: {}]
  %s4 = inlined_call_operand.vmem [shape: f32[128,128], index: 4, kind: input, shape index: {}]
  %s5 = inlined_call_operand.vmem [shape: f32[128,128], index: 5, kind: input, shape index: {}]
  %s6 = inlined_call_operand.vmem [shape: f32[1,256], index: 6, kind: input, shape index: {}]
  %s7 = inlined_call_operand.vmem [shape: f32[1,256], index: 7, kind: input, shape index: {}]
  %s8 = inlined_call_operand.vmem [shape: f32[128,8], index: 8, kind: input, shape index: {}]
  %s9 = inlined_call_operand.vmem [shape: f32[128,8], index: 9, kind: input, shape index: {}]
  %s10 = inlined_call_operand.vmem [shape: f32[1,8], index: 10, kind: input, shape index: {}]
  %s11 = inlined_call_operand.vmem [shape: f32[16,8], index: 11, kind: output, shape index: {}]
  %s12 = sld [smem:[#allocation0]]
  $region62: #{tpu_custom_call.1} parent=0
    _
  %s14 = ssub.s32 1, %s12
  %s15 = scalar_select 0, %s14, %s12
  $region1: #{tpu_custom_call.1} parent=0
    #allocation2 [shape = 'u8[16384]{0}', space=vmem, size = 0x4000, scoped, tag = 'input window, operand 1, single buffered']
    #allocation3 [shape = 's32[1]{0}', space=sflag, size = 0x4, scoped, tag = 'scoped memory for tpu_custom_call.1']
    #allocation4 [shape = 'u8[1024]{0}', space=vmem, size = 0x400, scoped, tag = 'input window, operand 3, single buffered']
    #allocation5 [shape = 's32[1]{0}', space=sflag, size = 0x4, scoped, tag = 'scoped memory for tpu_custom_call.1']
    %16 = vsyncpa [#allocation3], 0
    %17 = vsyncpa [#allocation5], 0
    // Predicated region
    $region2: #{tpu_custom_call.1} parent=1 // pred_check
      _
    $region3: #{tpu_custom_call.1} parent=1 // pred_check_branch
      %19 = sbr.rel (0) target = $region5
    $region4: #{tpu_custom_call.1} parent=1 // pred_region
      _
    $region5: #{tpu_custom_call.1} parent=1 // pred_fallthru
      _
    // Predicated region
    $region6: #{tpu_custom_call.1} parent=1 // pred_check
      _
    $region7: #{tpu_custom_call.1} parent=1 // pred_check_branch
      %21 = sbr.rel (0) target = $region9
    $region8: #{tpu_custom_call.1} parent=1 // pred_region
      %s23 = ssub.s32 512, 512
      %24 = vsyncadd [#allocation3], %s23
      %s25 = sshll.u32 [#allocation2], 4
      %s26 = int_to_ptr.vmem [resolvable:$true] %s25
      %31 = dma.hbm_to_vmem [thread:$0]  %s1, 512, %s26, [#allocation3], 256, 256, 16
    $region9: #{tpu_custom_call.1} parent=1 // pred_fallthru
      _
    // Predicated region
    $region10: #{tpu_custom_call.1} parent=1 // pred_check
      _
    $region11: #{tpu_custom_call.1} parent=1 // pred_check_branch
      %33 = sbr.rel (0) target = $region13
    $region12: #{tpu_custom_call.1} parent=1 // pred_region
      _
    $region13: #{tpu_custom_call.1} parent=1 // pred_fallthru
      _
    // Predicated region
    $region14: #{tpu_custom_call.1} parent=1 // pred_check
      _
    $region15: #{tpu_custom_call.1} parent=1 // pred_check_branch
      %35 = sbr.rel (0) target = $region17
    $region16: #{tpu_custom_call.1} parent=1 // pred_region
      %s37 = ssub.s32 32, 32
      %38 = vsyncadd [#allocation5], %s37
      %s40 = sshll.u32 [#allocation4], 4
      %s41 = int_to_ptr.vmem [resolvable:$true] %s40
      %43 = dma.hbm_to_vmem [thread:$0]  %s3, 32, %s41, [#allocation5]
    $region17: #{tpu_custom_call.1} parent=1 // pred_fallthru
      _
    // Predicated region
    $region18: #{tpu_custom_call.1} parent=1 // pred_check
      _
    $region19: #{tpu_custom_call.1} parent=1 // pred_check_branch
      %45 = sbr.rel (0) target = $region21
    $region20: #{tpu_custom_call.1} parent=1 // pred_region
      _
    $region21: #{tpu_custom_call.1} parent=1 // pred_fallthru
      _
    // Predicated region
    $region22: #{tpu_custom_call.1} parent=1 // pred_check
      _
    $region23: #{tpu_custom_call.1} parent=1 // pred_check_branch
      %47 = sbr.rel (0) target = $region25
    $region24: #{tpu_custom_call.1} parent=1 // pred_region
      _
    $region25: #{tpu_custom_call.1} parent=1 // pred_fallthru
      _
    // Predicated region
    $region26: #{tpu_custom_call.1} parent=1 // pred_check
      _
    $region27: #{tpu_custom_call.1} parent=1 // pred_check_branch
      %49 = sbr.rel (0) target = $region29
    $region28: #{tpu_custom_call.1} parent=1 // pred_region
      _
    $region29: #{tpu_custom_call.1} parent=1 // pred_fallthru
      _
    // Predicated region
    $region30: #{tpu_custom_call.1} parent=1 // pred_check
      _
    $region31: #{tpu_custom_call.1} parent=1 // pred_check_branch
      %51 = sbr.rel (0) target = $region33
    $region32: #{tpu_custom_call.1} parent=1 // pred_region
      _
    $region33: #{tpu_custom_call.1} parent=1 // pred_fallthru
      _
    // Predicated region
    $region34: #{tpu_custom_call.1} parent=1 // pred_check
      _
    $region35: #{tpu_custom_call.1} parent=1 // pred_check_branch
      %53 = sbr.rel (0) target = $region37
    $region36: #{tpu_custom_call.1} parent=1 // pred_region
      _
    $region37: #{tpu_custom_call.1} parent=1 // pred_fallthru
      _
    // Predicated region
    $region38: #{tpu_custom_call.1} parent=1 // pred_check
      _
    $region39: #{tpu_custom_call.1} parent=1 // pred_check_branch
      %55 = sbr.rel (0) target = $region41
    $region40: #{tpu_custom_call.1} parent=1 // pred_region
      _
    $region41: #{tpu_custom_call.1} parent=1 // pred_fallthru
      _
    // Predicated region
    $region42: #{tpu_custom_call.1} parent=1 // pred_check
      _
    $region43: #{tpu_custom_call.1} parent=1 // pred_check_branch
      %57 = sbr.rel (0) target = $region45
    $region44: #{tpu_custom_call.1} parent=1 // pred_region
      _
    $region45: #{tpu_custom_call.1} parent=1 // pred_fallthru
      _
    // Predicated region
    $region46: #{tpu_custom_call.1} parent=1 // pred_check
      _
    $region47: #{tpu_custom_call.1} parent=1 // pred_check_branch
      %59 = sbr.rel (0) target = $region49
    $region48: #{tpu_custom_call.1} parent=1 // pred_region
      %60 = dma.done [#allocation3], 512
    $region49: #{tpu_custom_call.1} parent=1 // pred_fallthru
      _
    // Predicated region
    $region50: #{tpu_custom_call.1} parent=1 // pred_check
      _
    $region51: #{tpu_custom_call.1} parent=1 // pred_check_branch
      %62 = sbr.rel (0) target = $region53
    $region52: #{tpu_custom_call.1} parent=1 // pred_region
      %63 = dma.done [#allocation5], 32
    $region53: #{tpu_custom_call.1} parent=1 // pred_fallthru
      _
    %v64 = vld [vmem:[%s0] sm:$0xff]
    %v65 = vld [vmem:[%s0 + $0x8] sm:$0xff]
    %v66 = vld [vmem:[#allocation2] sm:$0xff]
    %v67 = vld [vmem:[#allocation2 + $0x8] sm:$0xff]
    %v68 = vld [vmem:[#allocation2 + $0x10] sm:$0xff]
    %v69 = vld [vmem:[#allocation2 + $0x18] sm:$0xff]
    %v70 = vld [vmem:[%s2] sm:$0x3]
    %v72 = vlaneseq
    %v73 = vshrl.u32 %v72, 7
    %v74 = vsub.s32 0, %v73
    %v75 = vrot.slane %v70, %v74
    %v76 = vlaneseq
    %v77 = vshrl.u32 %v76, 7
    %v78 = vsub.s32 1, %v77
    %v79 = vrot.slane %v70, %v78
    %vm82 = vcmask 130048
    %v84 = vsel %vm82, %v64, 0
    %v87 = vsel %vm82, %v65, 0
    %89 = vmatprep.subr.mxu0 %v67
    %90 = vmatpush1.msra.mxu0 %v66
    %91 = vmatprep.subr.mxu0 %v69
    %92 = vmatpush1.msra.mxu0 %v68
    %93 = vmatprep.subr.mxu0 0.0
    %94 = vmatpush1.msra.mxu0 0.0
    %95 = vmatprep.subr.mxu0 0.0
    %96 = vmatpush1.msra.mxu0 0.0
    %97 = vmatprep.subr.mxu0 0.0
    %98 = vmatpush1.msra.mxu0 0.0
    %99 = vmatprep.subr.mxu0 0.0
    %100 = vmatpush1.msra.mxu0 0.0
    %101 = vmatprep.subr.mxu0 0.0
    %102 = vmatpush1.msra.mxu0 0.0
    %103 = vmatprep.subr.mxu0 0.0
    %104 = vmatpush1.msra.mxu0 0.0
    %105 = vmatprep.subr.mxu0 0.0
    %106 = vmatpush1.msra.mxu0 0.0
    %107 = vmatprep.subr.mxu0 0.0
    %108 = vmatpush1.msra.mxu0 0.0
    %109 = vmatprep.subr.mxu0 0.0
    %110 = vmatpush1.msra.mxu0 0.0
    %111 = vmatprep.subr.mxu0 0.0
    %112 = vmatpush1.msra.mxu0 0.0
    %113 = vmatprep.subr.mxu0 0.0
    %114 = vmatpush1.msra.mxu0 0.0
    %115 = vmatprep.subr.mxu0 0.0
    %116 = vmatpush1.msra.mxu0 0.0
    %117 = vmatprep.subr.mxu0 0.0
    %118 = vmatpush1.msra.mxu0 0.0
    %119 = vmatprep.subr.mxu0 0.0
    %120 = vmatpush1.msra.mxu0 0.0
    %121 = vmatprep.subr.mxu0 0.0
    %122 = vmatpush1.msra.mxu0 0.0
    %123 = vmatprep.subr.mxu0 0.0
    %124 = vmatpush1.msra.mxu0 0.0
    %125 = vmatprep.subr.mxu0 0.0
    %126 = vmatpush1.msra.mxu0 0.0
    %127 = vmatprep.subr.mxu0 0.0
    %128 = vmatpush1.msra.mxu0 0.0
    %129 = vmatprep.subr.mxu0 0.0
    %130 = vmatpush1.msra.mxu0 0.0
    %131 = vmatprep.subr.mxu0 0.0
    %132 = vmatpush1.msra.mxu0 0.0
    %133 = vmatprep.subr.mxu0 0.0
    %134 = vmatpush1.msra.mxu0 0.0
    %135 = vmatprep.subr.mxu0 0.0
    %136 = vmatpush1.msra.mxu0 0.0
    %137 = vmatprep.subr.mxu0 0.0
    %138 = vmatpush1.msra.mxu0 0.0
    %139 = vmatprep.subr.mxu0 0.0
    %140 = vmatpush1.msra.mxu0 0.0
    %141 = vmatprep.subr.mxu0 0.0
    %142 = vmatpush1.msra.mxu0 0.0
    %143 = vmatprep.subr.mxu0 0.0
    %144 = vmatpush1.msra.mxu0 0.0
    %145 = vmatprep.subr.mxu0 0.0
    %146 = vmatpush1.msra.mxu0 0.0
    %147 = vmatprep.subr.mxu0 0.0
    %148 = vmatpush1.msra.mxu0 0.0
    %149 = vmatprep.subr.mxu0 0.0
    %150 = vmatpush1.msra.mxu0 0.0
    %151 = vmatprep.subr.mxu0 0.0
    %152 = vmatpush1.msra.mxu0 0.0
    %153 = vmatprep.mubr.f32.mxu0 0.0
    %154 = vmatmul.mubr.f32.gmra.mrb[0].mxu0 %v84
    %v155 = vpop.f32.mrb[0].mxu0
    %v156 = vadd.f32 %v75, %v155
    %v157 = vpop.f32.mrb[0].mxu0
    %v158 = vadd.f32 %v79, %v157
    %159 = vmatprep.mubr.f32.mxu0 0.0
    %160 = vmatmul.mubr.f32.gmra.mrb[0].mxu0 %v87
    %v161 = vpop.f32.mrb[0].mxu0
    %v162 = vadd.f32 %v75, %v161
    %v163 = vpop.f32.mrb[0].mxu0
    %v164 = vadd.f32 %v79, %v163
    %165 = vdwg.mxu0
    %vm166 = vcmp.gt.f32.partialorder %v156, 0.0
    %vm167 = vcmp.gt.f32.partialorder %v158, 0.0
    %vm168 = vcmp.gt.f32.partialorder %v162, 0.0
    %vm169 = vcmp.gt.f32.partialorder %v164, 0.0
    %v170 = vld [vmem:[#allocation4] sm:$0x3]
    %v172 = vlaneseq
    %v173 = vshrl.u32 %v172, 7
    %v174 = vsub.s32 0, %v173
    %v175 = vrot.slane %v170, %v174
    %v176 = vlaneseq
    %v177 = vshrl.u32 %v176, 7
    %v178 = vsub.s32 1, %v177
    %v179 = vrot.slane %v170, %v178
    %v182 = vmul.f32 %v175, %v156
    %v183 = vmul.f32 %v179, %v158
    %v184 = vmul.f32 %v175, %v162
    %v185 = vmul.f32 %v179, %v164
    %v186 = vsel %vm166, %v156, %v182
    %v187 = vsel %vm167, %v158, %v183
    %v188 = vsel %vm168, %v162, %v184
    %v189 = vsel %vm169, %v164, %v185
    %v190 = vld [vmem:[%s4] sm:$0xff]
    %v191 = vld [vmem:[%s4 + $0x8] sm:$0xff]
    %v192 = vld [vmem:[%s4 + $0x10] sm:$0xff]
    %v193 = vld [vmem:[%s4 + $0x18] sm:$0xff]
    %v194 = vld [vmem:[%s4 + $0x20] sm:$0xff]
    %v195 = vld [vmem:[%s4 + $0x28] sm:$0xff]
    %v196 = vld [vmem:[%s4 + $0x30] sm:$0xff]
    %v197 = vld [vmem:[%s4 + $0x38] sm:$0xff]
    %v198 = vld [vmem:[%s4 + $0x40] sm:$0xff]
    %v199 = vld [vmem:[%s4 + $0x48] sm:$0xff]
    %v200 = vld [vmem:[%s4 + $0x50] sm:$0xff]
    %v201 = vld [vmem:[%s4 + $0x58] sm:$0xff]
    %v202 = vld [vmem:[%s4 + $0x60] sm:$0xff]
    %v203 = vld [vmem:[%s4 + $0x68] sm:$0xff]
    %v204 = vld [vmem:[%s4 + $0x70] sm:$0xff]
    %v205 = vld [vmem:[%s4 + $0x78] sm:$0xff]
    %v206 = vld [vmem:[%s6] sm:$0x1]
    %v208 = vlaneseq
    %v209 = vshrl.u32 %v208, 7
    %v210 = vsub.s32 0, %v209
    %v211 = vrot.slane %v206, %v210
    %213 = vmatprep.subr.mxu0 0.0
    %214 = vmatpush1.msra.mxu0 %v190
    %215 = vmatprep.subr.mxu0 0.0
    %216 = vmatpush1.msra.mxu0 %v191
    %217 = vmatprep.subr.mxu0 0.0
    %218 = vmatpush1.msra.mxu0 %v192
    %219 = vmatprep.subr.mxu0 0.0
    %220 = vmatpush1.msra.mxu0 %v193
    %221 = vmatprep.subr.mxu0 0.0
    %222 = vmatpush1.msra.mxu0 %v194
    %223 = vmatprep.subr.mxu0 0.0
    %224 = vmatpush1.msra.mxu0 %v195
    %225 = vmatprep.subr.mxu0 0.0
    %226 = vmatpush1.msra.mxu0 %v196
    %227 = vmatprep.subr.mxu0 0.0
    %228 = vmatpush1.msra.mxu0 %v197
    %229 = vmatprep.subr.mxu0 0.0
    %230 = vmatpush1.msra.mxu0 %v198
    %231 = vmatprep.subr.mxu0 0.0
    %232 = vmatpush1.msra.mxu0 %v199
    %233 = vmatprep.subr.mxu0 0.0
    %234 = vmatpush1.msra.mxu0 %v200
    %235 = vmatprep.subr.mxu0 0.0
    %236 = vmatpush1.msra.mxu0 %v201
    %237 = vmatprep.subr.mxu0 0.0
    %238 = vmatpush1.msra.mxu0 %v202
    %239 = vmatprep.subr.mxu0 0.0
    %240 = vmatpush1.msra.mxu0 %v203
    %241 = vmatprep.subr.mxu0 0.0
    %242 = vmatpush1.msra.mxu0 %v204
    %243 = vmatprep.subr.mxu0 0.0
    %244 = vmatpush1.msra.mxu0 %v205
    %245 = vmatprep.subr.mxu0 0.0
    %246 = vmatpush1.msra.mxu0 0.0
    %247 = vmatprep.subr.mxu0 0.0
    %248 = vmatpush1.msra.mxu0 0.0
    %249 = vmatprep.subr.mxu0 0.0
    %250 = vmatpush1.msra.mxu0 0.0
    %251 = vmatprep.subr.mxu0 0.0
    %252 = vmatpush1.msra.mxu0 0.0
    %253 = vmatprep.subr.mxu0 0.0
    %254 = vmatpush1.msra.mxu0 0.0
    %255 = vmatprep.subr.mxu0 0.0
    %256 = vmatpush1.msra.mxu0 0.0
    %257 = vmatprep.subr.mxu0 0.0
    %258 = vmatpush1.msra.mxu0 0.0
    %259 = vmatprep.subr.mxu0 0.0
    %260 = vmatpush1.msra.mxu0 0.0
    %261 = vmatprep.subr.mxu0 0.0
    %262 = vmatpush1.msra.mxu0 0.0
    %263 = vmatprep.subr.mxu0 0.0
    %264 = vmatpush1.msra.mxu0 0.0
    %265 = vmatprep.subr.mxu0 0.0
    %266 = vmatpush1.msra.mxu0 0.0
    %267 = vmatprep.subr.mxu0 0.0
    %268 = vmatpush1.msra.mxu0 0.0
    %269 = vmatprep.subr.mxu0 0.0
    %270 = vmatpush1.msra.mxu0 0.0
    %271 = vmatprep.subr.mxu0 0.0
    %272 = vmatpush1.msra.mxu0 0.0
    %273 = vmatprep.subr.mxu0 0.0
    %274 = vmatpush1.msra.mxu0 0.0
    %275 = vmatprep.subr.mxu0 0.0
    %276 = vmatpush1.msra.mxu0 0.0
    %277 = vmatprep.mubr.f32.mxu0 0.0
    %278 = vmatmul.mubr.f32.gmra.mrb[0].mxu0 %v186
    %v279 = vpop.f32.mrb[0].mxu0
    %v280 = vadd.f32 %v211, %v279
    %v281 = vpop.f32.mrb[0].mxu0
    %282 = vmatprep.mubr.f32.mxu0 0.0
    %283 = vmatmul.mubr.f32.gmra.mrb[0].mxu0 %v188
    %v284 = vpop.f32.mrb[0].mxu0
    %v285 = vadd.f32 %v211, %v284
    %v286 = vpop.f32.mrb[0].mxu0
    %287 = vdwg.mxu0
    %v288 = vld [vmem:[%s5] sm:$0xff]
    %v289 = vld [vmem:[%s5 + $0x8] sm:$0xff]
    %v290 = vld [vmem:[%s5 + $0x10] sm:$0xff]
    %v291 = vld [vmem:[%s5 + $0x18] sm:$0xff]
    %v292 = vld [vmem:[%s5 + $0x20] sm:$0xff]
    %v293 = vld [vmem:[%s5 + $0x28] sm:$0xff]
    %v294 = vld [vmem:[%s5 + $0x30] sm:$0xff]
    %v295 = vld [vmem:[%s5 + $0x38] sm:$0xff]
    %v296 = vld [vmem:[%s5 + $0x40] sm:$0xff]
    %v297 = vld [vmem:[%s5 + $0x48] sm:$0xff]
    %v298 = vld [vmem:[%s5 + $0x50] sm:$0xff]
    %v299 = vld [vmem:[%s5 + $0x58] sm:$0xff]
    %v300 = vld [vmem:[%s5 + $0x60] sm:$0xff]
    %v301 = vld [vmem:[%s5 + $0x68] sm:$0xff]
    %v302 = vld [vmem:[%s5 + $0x70] sm:$0xff]
    %v303 = vld [vmem:[%s5 + $0x78] sm:$0xff]
    %v304 = vld [vmem:[%s6 + $0x1] sm:$0x1]
    %v306 = vlaneseq
    %v307 = vshrl.u32 %v306, 7
    %v308 = vsub.s32 0, %v307
    %v309 = vrot.slane %v304, %v308
    %311 = vmatprep.subr.mxu0 0.0
    %312 = vmatpush1.msra.mxu0 %v288
    %313 = vmatprep.subr.mxu0 0.0
    %314 = vmatpush1.msra.mxu0 %v289
    %315 = vmatprep.subr.mxu0 0.0
    %316 = vmatpush1.msra.mxu0 %v290
    %317 = vmatprep.subr.mxu0 0.0
    %318 = vmatpush1.msra.mxu0 %v291
    %319 = vmatprep.subr.mxu0 0.0
    %320 = vmatpush1.msra.mxu0 %v292
    %321 = vmatprep.subr.mxu0 0.0
    %322 = vmatpush1.msra.mxu0 %v293
    %323 = vmatprep.subr.mxu0 0.0
    %324 = vmatpush1.msra.mxu0 %v294
    %325 = vmatprep.subr.mxu0 0.0
    %326 = vmatpush1.msra.mxu0 %v295
    %327 = vmatprep.subr.mxu0 0.0
    %328 = vmatpush1.msra.mxu0 %v296
    %329 = vmatprep.subr.mxu0 0.0
    %330 = vmatpush1.msra.mxu0 %v297
    %331 = vmatprep.subr.mxu0 0.0
    %332 = vmatpush1.msra.mxu0 %v298
    %333 = vmatprep.subr.mxu0 0.0
    %334 = vmatpush1.msra.mxu0 %v299
    %335 = vmatprep.subr.mxu0 0.0
    %336 = vmatpush1.msra.mxu0 %v300
    %337 = vmatprep.subr.mxu0 0.0
    %338 = vmatpush1.msra.mxu0 %v301
    %339 = vmatprep.subr.mxu0 0.0
    %340 = vmatpush1.msra.mxu0 %v302
    %341 = vmatprep.subr.mxu0 0.0
    %342 = vmatpush1.msra.mxu0 %v303
    %343 = vmatprep.subr.mxu0 0.0
    %344 = vmatpush1.msra.mxu0 0.0
    %345 = vmatprep.subr.mxu0 0.0
    %346 = vmatpush1.msra.mxu0 0.0
    %347 = vmatprep.subr.mxu0 0.0
    %348 = vmatpush1.msra.mxu0 0.0
    %349 = vmatprep.subr.mxu0 0.0
    %350 = vmatpush1.msra.mxu0 0.0
    %351 = vmatprep.subr.mxu0 0.0
    %352 = vmatpush1.msra.mxu0 0.0
    %353 = vmatprep.subr.mxu0 0.0
    %354 = vmatpush1.msra.mxu0 0.0
    %355 = vmatprep.subr.mxu0 0.0
    %356 = vmatpush1.msra.mxu0 0.0
    %357 = vmatprep.subr.mxu0 0.0
    %358 = vmatpush1.msra.mxu0 0.0
    %359 = vmatprep.subr.mxu0 0.0
    %360 = vmatpush1.msra.mxu0 0.0
    %361 = vmatprep.subr.mxu0 0.0
    %362 = vmatpush1.msra.mxu0 0.0
    %363 = vmatprep.subr.mxu0 0.0
    %364 = vmatpush1.msra.mxu0 0.0
    %365 = vmatprep.subr.mxu0 0.0
    %366 = vmatpush1.msra.mxu0 0.0
    %367 = vmatprep.subr.mxu0 0.0
    %368 = vmatpush1.msra.mxu0 0.0
    %369 = vmatprep.subr.mxu0 0.0
    %370 = vmatpush1.msra.mxu0 0.0
    %371 = vmatprep.subr.mxu0 0.0
    %372 = vmatpush1.msra.mxu0 0.0
    %373 = vmatprep.subr.mxu0 0.0
    %374 = vmatpush1.msra.mxu0 0.0
    %375 = vmatprep.mubr.f32.mxu0 0.0
    %376 = vmatmul.mubr.f32.gmra.mrb[0].mxu0 %v187
    %v377 = vpop.f32.mrb[0].mxu0
    %v378 = vadd.f32 %v309, %v377
    %v379 = vpop.f32.mrb[0].mxu0
    %380 = vmatprep.mubr.f32.mxu0 0.0
    %381 = vmatmul.mubr.f32.gmra.mrb[0].mxu0 %v189
    %v382 = vpop.f32.mrb[0].mxu0
    %v383 = vadd.f32 %v309, %v382
    %v384 = vpop.f32.mrb[0].mxu0
    %385 = vdwg.mxu0
    %vm386 = vcmp.gt.f32.partialorder %v280, 0.0
    %vm387 = vcmp.gt.f32.partialorder %v285, 0.0
    %v388 = vld [vmem:[%s7] sm:$0x1]
    %v390 = vlaneseq
    %v391 = vshrl.u32 %v390, 7
    %v392 = vsub.s32 0, %v391
    %v393 = vrot.slane %v388, %v392
    %v395 = vmul.f32 %v393, %v280
    %v396 = vmul.f32 %v393, %v285
    %v397 = vsel %vm386, %v280, %v395
    %v398 = vsel %vm387, %v285, %v396
    %vm399 = vcmp.gt.f32.partialorder %v378, 0.0
    %vm400 = vcmp.gt.f32.partialorder %v383, 0.0
    %v401 = vld [vmem:[%s7 + $0x1] sm:$0x1]
    %v403 = vlaneseq
    %v404 = vshrl.u32 %v403, 7
    %v405 = vsub.s32 0, %v404
    %v406 = vrot.slane %v401, %v405
    %v408 = vmul.f32 %v406, %v378
    %v409 = vmul.f32 %v406, %v383
    %v410 = vsel %vm399, %v378, %v408
    %v411 = vsel %vm400, %v383, %v409
    %v412 = vld [vmem:[%s8] sm:$0xff]
    %v413 = vld [vmem:[%s8 + $0x8] sm:$0xff]
    %v414 = vld [vmem:[%s8 + $0x10] sm:$0xff]
    %v415 = vld [vmem:[%s8 + $0x18] sm:$0xff]
    %v416 = vld [vmem:[%s8 + $0x20] sm:$0xff]
    %v417 = vld [vmem:[%s8 + $0x28] sm:$0xff]
    %v418 = vld [vmem:[%s8 + $0x30] sm:$0xff]
    %v419 = vld [vmem:[%s8 + $0x38] sm:$0xff]
    %v420 = vld [vmem:[%s8 + $0x40] sm:$0xff]
    %v421 = vld [vmem:[%s8 + $0x48] sm:$0xff]
    %v422 = vld [vmem:[%s8 + $0x50] sm:$0xff]
    %v423 = vld [vmem:[%s8 + $0x58] sm:$0xff]
    %v424 = vld [vmem:[%s8 + $0x60] sm:$0xff]
    %v425 = vld [vmem:[%s8 + $0x68] sm:$0xff]
    %v426 = vld [vmem:[%s8 + $0x70] sm:$0xff]
    %v427 = vld [vmem:[%s8 + $0x78] sm:$0xff]
    %v428 = vld [vmem:[%s9] sm:$0xff]
    %v429 = vld [vmem:[%s9 + $0x8] sm:$0xff]
    %v430 = vld [vmem:[%s9 + $0x10] sm:$0xff]
    %v431 = vld [vmem:[%s9 + $0x18] sm:$0xff]
    %v432 = vld [vmem:[%s9 + $0x20] sm:$0xff]
    %v433 = vld [vmem:[%s9 + $0x28] sm:$0xff]
    %v434 = vld [vmem:[%s9 + $0x30] sm:$0xff]
    %v435 = vld [vmem:[%s9 + $0x38] sm:$0xff]
    %v436 = vld [vmem:[%s9 + $0x40] sm:$0xff]
    %v437 = vld [vmem:[%s9 + $0x48] sm:$0xff]
    %v438 = vld [vmem:[%s9 + $0x50] sm:$0xff]
    %v439 = vld [vmem:[%s9 + $0x58] sm:$0xff]
    %v440 = vld [vmem:[%s9 + $0x60] sm:$0xff]
    %v441 = vld [vmem:[%s9 + $0x68] sm:$0xff]
    %v442 = vld [vmem:[%s9 + $0x70] sm:$0xff]
    %v443 = vld [vmem:[%s9 + $0x78] sm:$0xff]
    %444 = vmatprep.subr.mxu0 0.0
    %445 = vmatpush1.msra.mxu0 %v428
    %446 = vmatprep.subr.mxu0 0.0
    %447 = vmatpush1.msra.mxu0 %v429
    %448 = vmatprep.subr.mxu0 0.0
    %449 = vmatpush1.msra.mxu0 %v430
    %450 = vmatprep.subr.mxu0 0.0
    %451 = vmatpush1.msra.mxu0 %v431
    %452 = vmatprep.subr.mxu0 0.0
    %453 = vmatpush1.msra.mxu0 %v432
    %454 = vmatprep.subr.mxu0 0.0
    %455 = vmatpush1.msra.mxu0 %v433
    %456 = vmatprep.subr.mxu0 0.0
    %457 = vmatpush1.msra.mxu0 %v434
    %458 = vmatprep.subr.mxu0 0.0
    %459 = vmatpush1.msra.mxu0 %v435
    %460 = vmatprep.subr.mxu0 0.0
    %461 = vmatpush1.msra.mxu0 %v436
    %462 = vmatprep.subr.mxu0 0.0
    %463 = vmatpush1.msra.mxu0 %v437
    %464 = vmatprep.subr.mxu0 0.0
    %465 = vmatpush1.msra.mxu0 %v438
    %466 = vmatprep.subr.mxu0 0.0
    %467 = vmatpush1.msra.mxu0 %v439
    %468 = vmatprep.subr.mxu0 0.0
    %469 = vmatpush1.msra.mxu0 %v440
    %470 = vmatprep.subr.mxu0 0.0
    %471 = vmatpush1.msra.mxu0 %v441
    %472 = vmatprep.subr.mxu0 0.0
    %473 = vmatpush1.msra.mxu0 %v442
    %474 = vmatprep.subr.mxu0 0.0
    %475 = vmatpush1.msra.mxu0 %v443
    %476 = vmatprep.subr.mxu0 0.0
    %477 = vmatpush1.msra.mxu0 0.0
    %478 = vmatprep.subr.mxu0 0.0
    %479 = vmatpush1.msra.mxu0 0.0
    %480 = vmatprep.subr.mxu0 0.0
    %481 = vmatpush1.msra.mxu0 0.0
    %482 = vmatprep.subr.mxu0 0.0
    %483 = vmatpush1.msra.mxu0 0.0
    %484 = vmatprep.subr.mxu0 0.0
    %485 = vmatpush1.msra.mxu0 0.0
    %486 = vmatprep.subr.mxu0 0.0
    %487 = vmatpush1.msra.mxu0 0.0
    %488 = vmatprep.subr.mxu0 0.0
    %489 = vmatpush1.msra.mxu0 0.0
    %490 = vmatprep.subr.mxu0 0.0
    %491 = vmatpush1.msra.mxu0 0.0
    %492 = vmatprep.subr.mxu0 0.0
    %493 = vmatpush1.msra.mxu0 0.0
    %494 = vmatprep.subr.mxu0 0.0
    %495 = vmatpush1.msra.mxu0 0.0
    %496 = vmatprep.subr.mxu0 0.0
    %497 = vmatpush1.msra.mxu0 0.0
    %498 = vmatprep.subr.mxu0 0.0
    %499 = vmatpush1.msra.mxu0 0.0
    %500 = vmatprep.subr.mxu0 0.0
    %501 = vmatpush1.msra.mxu0 0.0
    %502 = vmatprep.subr.mxu0 0.0
    %503 = vmatpush1.msra.mxu0 0.0
    %504 = vmatprep.subr.mxu0 0.0
    %505 = vmatpush1.msra.mxu0 0.0
    %506 = vmatprep.subr.mxu0 0.0
    %507 = vmatpush1.msra.mxu0 0.0
    %508 = vmatprep.mubr.f32.mxu0 0.0
    %509 = vmatmul.mubr.f32.gmra.mrb[0].mxu0 %v410
    %v510 = vpop.f32.mrb[0].mxu0
    %v511 = vadd.f32 0.0, %v510
    %v512 = vpop.f32.mrb[0].mxu0
    %513 = vmatprep.mubr.f32.mxu0 0.0
    %514 = vmatmul.mubr.f32.gmra.mrb[0].mxu0 %v411
    %v515 = vpop.f32.mrb[0].mxu0
    %v516 = vadd.f32 0.0, %v515
    %v517 = vpop.f32.mrb[0].mxu0
    %518 = vdwg.mxu0
    %519 = vmatprep.subr.mxu0 0.0
    %520 = vmatpush1.msra.mxu0 %v412
    %521 = vmatprep.subr.mxu0 0.0
    %522 = vmatpush1.msra.mxu0 %v413
    %523 = vmatprep.subr.mxu0 0.0
    %524 = vmatpush1.msra.mxu0 %v414
    %525 = vmatprep.subr.mxu0 0.0
    %526 = vmatpush1.msra.mxu0 %v415
    %527 = vmatprep.subr.mxu0 0.0
    %528 = vmatpush1.msra.mxu0 %v416
    %529 = vmatprep.subr.mxu0 0.0
    %530 = vmatpush1.msra.mxu0 %v417
    %531 = vmatprep.subr.mxu0 0.0
    %532 = vmatpush1.msra.mxu0 %v418
    %533 = vmatprep.subr.mxu0 0.0
    %534 = vmatpush1.msra.mxu0 %v419
    %535 = vmatprep.subr.mxu0 0.0
    %536 = vmatpush1.msra.mxu0 %v420
    %537 = vmatprep.subr.mxu0 0.0
    %538 = vmatpush1.msra.mxu0 %v421
    %539 = vmatprep.subr.mxu0 0.0
    %540 = vmatpush1.msra.mxu0 %v422
    %541 = vmatprep.subr.mxu0 0.0
    %542 = vmatpush1.msra.mxu0 %v423
    %543 = vmatprep.subr.mxu0 0.0
    %544 = vmatpush1.msra.mxu0 %v424
    %545 = vmatprep.subr.mxu0 0.0
    %546 = vmatpush1.msra.mxu0 %v425
    %547 = vmatprep.subr.mxu0 0.0
    %548 = vmatpush1.msra.mxu0 %v426
    %549 = vmatprep.subr.mxu0 0.0
    %550 = vmatpush1.msra.mxu0 %v427
    %551 = vmatprep.subr.mxu0 0.0
    %552 = vmatpush1.msra.mxu0 0.0
    %553 = vmatprep.subr.mxu0 0.0
    %554 = vmatpush1.msra.mxu0 0.0
    %555 = vmatprep.subr.mxu0 0.0
    %556 = vmatpush1.msra.mxu0 0.0
    %557 = vmatprep.subr.mxu0 0.0
    %558 = vmatpush1.msra.mxu0 0.0
    %559 = vmatprep.subr.mxu0 0.0
    %560 = vmatpush1.msra.mxu0 0.0
    %561 = vmatprep.subr.mxu0 0.0
    %562 = vmatpush1.msra.mxu0 0.0
    %563 = vmatprep.subr.mxu0 0.0
    %564 = vmatpush1.msra.mxu0 0.0
    %565 = vmatprep.subr.mxu0 0.0
    %566 = vmatpush1.msra.mxu0 0.0
    %567 = vmatprep.subr.mxu0 0.0
    %568 = vmatpush1.msra.mxu0 0.0
    %569 = vmatprep.subr.mxu0 0.0
    %570 = vmatpush1.msra.mxu0 0.0
    %571 = vmatprep.subr.mxu0 0.0
    %572 = vmatpush1.msra.mxu0 0.0
    %573 = vmatprep.subr.mxu0 0.0
    %574 = vmatpush1.msra.mxu0 0.0
    %575 = vmatprep.subr.mxu0 0.0
    %576 = vmatpush1.msra.mxu0 0.0
    %577 = vmatprep.subr.mxu0 0.0
    %578 = vmatpush1.msra.mxu0 0.0
    %579 = vmatprep.subr.mxu0 0.0
    %580 = vmatpush1.msra.mxu0 0.0
    %581 = vmatprep.subr.mxu0 0.0
    %582 = vmatpush1.msra.mxu0 0.0
    %583 = vmatprep.mubr.f32.mxu0 0.0
    %584 = vmatmul.mubr.f32.gmra.mrb[0].mxu0 %v397
    %v585 = vpop.f32.mrb[0].mxu0
    %v586 = vadd.f32 %v511, %v585
    %v587 = vpop.f32.mrb[0].mxu0
    %588 = vmatprep.mubr.f32.mxu0 0.0
    %589 = vmatmul.mubr.f32.gmra.mrb[0].mxu0 %v398
    %v590 = vpop.f32.mrb[0].mxu0
    %v591 = vadd.f32 %v516, %v590
    %v592 = vpop.f32.mrb[0].mxu0
    %593 = vdwg.mxu0
    %v594 = vld [vmem:[%s10] sm:$0x1]
    %v596 = vlaneseq
    %v597 = vshrl.u32 %v596, 7
    %v598 = vsub.s32 0, %v597
    %v599 = vrot.slane %v594, %v598
    %v601 = vadd.f32 %v586, %v599
    %v602 = vadd.f32 %v591, %v599
    %vm603 = vcmask 64512
    %604 = vst.msk [vmem:[%s11] sm:$0xff] %vm603, %v601
    %605 = vst.msk [vmem:[%s11 + $0x8] sm:$0xff] %vm603, %v602
    // Predicated region
    $region54: #{tpu_custom_call.1} parent=1 // pred_check
      _
    $region55: #{tpu_custom_call.1} parent=1 // pred_check_branch
      %607 = sbr.rel (0) target = $region57
    $region56: #{tpu_custom_call.1} parent=1 // pred_region
      _
    $region57: #{tpu_custom_call.1} parent=1 // pred_fallthru
      _
    // Predicated region
    $region58: #{tpu_custom_call.1} parent=1 // pred_check
      _
    $region59: #{tpu_custom_call.1} parent=1 // pred_check_branch
      %609 = sbr.rel (0) target = $region61
    $region60: #{tpu_custom_call.1} parent=1 // pred_region
      _
    $region61: #{tpu_custom_call.1} parent=1 // pred_fallthru
      _
    %610 = vsyncpa [#allocation3], 1
    %611 = vsyncpa [#allocation5], 1

</llo_original>
